<compile_context>
chip_gen: v7x
topology: tpu7x:2x2x1
jax: 0.10.0
libtpu: 0.0.40
codegen_flags: <defaults>
</compile_context>

<pallas_src>
import functools
import math

import jax
import jax.numpy as jnp
from jax.experimental import pallas as pl
from jax.experimental.pallas import tpu as pltpu


_LOG_CLAMPED_ZERO = math.log(1e-4)   # log of the clamped "zero" one-hot entries
_NUM_CORE_SPLIT = 2                  # leading 'parallel' grid axis (2nd TC on v7x)


def _round_up(x, m):
    return (x + m - 1) // m * m


def _cdiv(a, b):
    return (a + b - 1) // b


def _sce_kernel(pred_ref, labels_ref, out_ref, acc_ref, *,
                alpha, beta, n_actual, tile_n, tiles_per_core):
    """Processes one (TN, C) slab of samples.

    pred_ref   : (TN, C) VMEM (input dtype) — samples on sublanes, classes on lanes
    labels_ref : (TN, 1) i32 VMEM
    out_ref    : (8, 128) f32 VMEM — this core's partial loss (broadcast), written
                 on the last 'arbitrary' step
    acc_ref    : (1, 1)  f32 VMEM — running partial sum for this core
    """
    core = pl.program_id(0)            # parallel axis (split across TCs on v7x)
    t = pl.program_id(1)               # arbitrary (reduction) axis

    @pl.when(t == 0)
    def _():
        acc_ref[...] = jnp.zeros_like(acc_ref)

    pred = pred_ref[...].astype(jnp.float32)            # (TN, C)
    labels = labels_ref[...]                            # (TN, 1) int32
    tn, c = pred.shape

    # Global row range of this *logical* tile (the DMA'd block may have been
    # clamped in the index_map; in that case every row here is masked out).
    g = core * tiles_per_core + t
    row0 = g * tile_n
    row_ids = jax.lax.broadcasted_iota(jnp.int32, (tn, 1), 0) + row0
    valid = row_ids < n_actual                          # (TN, 1) bool

    # One-hot along the class (lane) axis.
    class_ids = jax.lax.broadcasted_iota(jnp.int32, (tn, c), 1)
    is_label = class_ids == labels                      # (TN, C) bool

    # ---- fused cross entropy: ce_i = log(sum_exp_i) - (x[label_i] - m_i) ----
    m = jnp.max(pred, axis=1, keepdims=True)            # (TN, 1)
    shifted = pred - m
    # Rows past N (ragged last tile / clamped tiles) were never DMA'd and hold
    # garbage; neutralize BEFORE exp so no Inf/NaN can reach the accumulator.
    shifted = jnp.where(valid, shifted, 0.0)

    exp_s = jnp.exp(shifted)                            # only (TN, C) transcendental
    sum_exp = jnp.sum(exp_s, axis=1, keepdims=True)     # (TN, 1)
    inv = 1.0 / sum_exp                                 # per-row exact reciprocal
    shifted_lab = jnp.sum(jnp.where(is_label, shifted, 0.0),
                          axis=1, keepdims=True)        # (TN, 1)
    ce_per = jnp.log(sum_exp) - shifted_lab             # (TN, 1)

    # ---- reverse cross entropy ----
    # log(clamp(one_hot, 1e-4, 1)) == 0 at the label, log(1e-4) elsewhere.
    p = jnp.clip(exp_s * inv, 1e-7, 1.0)                # clamped softmax (TN, C)
    rce_per = (-_LOG_CLAMPED_ZERO) * jnp.sum(jnp.where(is_label, 0.0, p),
                                             axis=1, keepdims=True)

    per_row = (alpha * ce_per + beta * rce_per) * valid.astype(jnp.float32)
    acc_ref[...] += jnp.sum(per_row, axis=0, keepdims=True)     # (1, 1)

    @pl.when(t == pl.num_programs(1) - 1)
    def _():
        out_ref[...] = jnp.broadcast_to(acc_ref[...] * (1.0 / n_actual),
                                        out_ref.shape)


def sce_loss(pred, labels, *, alpha=1.0, beta=1.0, num_classes=10,
             tile_n=16384):
    """pred: (N, C) float (f32 or bf16), labels: (N,) int -> scalar f32 loss."""
    n, c = pred.shape
    assert c == num_classes

    # --- adaptive tiling with bounded pad waste ---
    cap = max(8, _round_up(min(int(tile_n), n), 8))
    total_tiles = _cdiv(n, cap)
    tiles_per_core = _cdiv(total_tiles, _NUM_CORE_SPLIT)
    total_tiles = tiles_per_core * _NUM_CORE_SPLIT
    tn = _round_up(_cdiv(n, total_tiles), 8)            # waste <= a few rows
    last_tile = (n - 1) // tn                           # last tile whose start < n

    labels2 = labels.reshape(n, 1).astype(jnp.int32)    # free reshape, no HBM pass

    def in_map(c_, t_):
        # Clamp so a fully-past-the-end tile (tiny N) re-reads an in-bounds
        # block instead of issuing an OOB DMA; its rows are masked in-kernel.
        g = jnp.minimum(c_ * tiles_per_core + t_, last_tile)
        return (g, 0)

    def out_map(c_, t_):
        return (c_, 0)

    # --- VMEM budget from the chosen TN (lane-padded, double-buffered) ---
    psz = pred.dtype.itemsize
    pred_blk = _round_up(tn, 32) * 128 * psz            # (TN, C) lane-padded to 128
    lab_blk = _round_up(tn, 8) * 128 * 4                # (TN, 1) lane-padded to 128
    vmem_bytes = 2 * (pred_blk + lab_blk) + (2 << 20)   # double-buffered + slack
    vmem_limit = int(min(max(vmem_bytes + (4 << 20), 16 << 20), 100 << 20))

    kernel = functools.partial(
        _sce_kernel, alpha=float(alpha), beta=float(beta),
        n_actual=n, tile_n=tn, tiles_per_core=tiles_per_core)

    out = pl.pallas_call(
        kernel,
        out_shape=jax.ShapeDtypeStruct((_NUM_CORE_SPLIT * 8, 128), jnp.float32),
        grid=(_NUM_CORE_SPLIT, tiles_per_core),
        in_specs=[
            pl.BlockSpec((tn, c), in_map),              # pred  (TN, C)
            pl.BlockSpec((tn, 1), in_map),              # labels (TN, 1)
        ],
        out_specs=pl.BlockSpec((8, 128), out_map),      # per-core partial block
        scratch_shapes=[pltpu.VMEM((1, 1), jnp.float32)],
        compiler_params=pltpu.CompilerParams(
            dimension_semantics=("parallel", "arbitrary"),
            vmem_limit_bytes=vmem_limit),
    )(pred, labels2)

    partials = out.reshape(_NUM_CORE_SPLIT, 8, 128)[:, 0, 0]
    return jnp.sum(partials)                            # already divided by N in-kernel


def _sce_loss_ref(pred, labels, *, alpha=1.0, beta=1.0, num_classes=10):
    # pure-JAX reference for validation
    log_p = jax.nn.log_softmax(pred.astype(jnp.float32), axis=1)
    oh = jax.nn.one_hot(labels, num_classes, dtype=jnp.float32)
    ce = jnp.mean(-jnp.sum(oh * log_p, axis=1))
    p = jnp.clip(jax.nn.softmax(pred.astype(jnp.float32), axis=1), 1e-7, 1.0)
    rce = jnp.mean(-jnp.sum(p * jnp.log(jnp.clip(oh, 1e-4, 1.0)), axis=1))
    return alpha * ce + beta * rce


if __name__ == "__main__":
    key = jax.random.PRNGKey(0)
    k1, k2, k3, k4 = jax.random.split(key, 4)

    # Small shape from the module spec: batch=8 samples, num_classes=10.
    N, NUM_CLASSES = 8, 10
    pred = jax.random.normal(k1, (N, NUM_CLASSES), dtype=jnp.float32) * 3.0
    labels = jax.random.randint(k2, (N,), 0, NUM_CLASSES, dtype=jnp.int32)

    loss = sce_loss(pred, labels, alpha=1.0, beta=1.0,
                    num_classes=NUM_CLASSES)
    loss = jax.block_until_ready(loss)
    ref = _sce_loss_ref(pred, labels, alpha=1.0, beta=1.0,
                        num_classes=NUM_CLASSES)
    assert jnp.allclose(loss, ref, rtol=1e-5, atol=1e-5), (loss, ref)

    # Second check: multi-tile grid on both cores + ragged last tile (N % TN != 0).
    N2 = 300
    pred2 = jax.random.normal(k3, (N2, NUM_CLASSES), dtype=jnp.float32) * 3.0
    labels2 = jax.random.randint(k4, (N2,), 0, NUM_CLASSES, dtype=jnp.int32)
    loss2 = sce_loss(pred2, labels2, alpha=0.5, beta=2.0,
                     num_classes=NUM_CLASSES, tile_n=128)
    loss2 = jax.block_until_ready(loss2)
    ref2 = _sce_loss_ref(pred2, labels2, alpha=0.5, beta=2.0,
                         num_classes=NUM_CLASSES)
    assert jnp.allclose(loss2, ref2, rtol=1e-5, atol=1e-5), (loss2, ref2)

    print("KERNEL_OK")
</pallas_src>

<mosaic_0001>
module attributes {stable_mosaic.version = 11 : i64} {
  func.func @_sce_kernel(%arg0: i32, %arg1: i32, %arg2: memref<8x10xf32, #tpu.memory_space<vmem>>, %arg3: memref<8x1xi32, #tpu.memory_space<vmem>>, %arg4: memref<8x128xf32, #tpu.memory_space<vmem>>, %arg5: memref<1x1xf32, #tpu.memory_space<vmem>>) attributes {dimension_semantics = [#tpu.dimension_semantics<parallel>, #tpu.dimension_semantics<arbitrary>], iteration_bounds = array<i64: 2, 1>, scalar_prefetch = 0 : i64, scratch_operands = 1 : i64, tpu.core_type = #tpu.core_type<tc>, window_params = [{transform_indices = @transform_0, window_bounds = array<i64: 8, 10>}, {transform_indices = @transform_1, window_bounds = array<i64: 8, 1>}, {transform_indices = @transform_2, window_bounds = array<i64: 8, 128>}]} {
    %c0_i32 = arith.constant 0 : i32
    %0 = arith.cmpi eq, %arg1, %c0_i32 : i32
    %1 = arith.extui %0 : i1 to i32
    %c0_i32_0 = arith.constant 0 : i32
    %2 = arith.cmpi ne, %1, %c0_i32_0 : i32
    scf.if %2 {
      %cst_24 = arith.constant 0.000000e+00 : f32
      %63 = vector.broadcast %cst_24 : f32 to vector<1x1xf32>
      %c0_25 = arith.constant 0 : index
      %c0_26 = arith.constant 0 : index
      %64 = vector.load %arg5[%c0_25, %c0_26] : memref<1x1xf32, #tpu.memory_space<vmem>>, vector<1x1xf32>
      tpu.vector_store %arg5[%c0_25, %c0_26], %63 {strides = array<i32>} : memref<1x1xf32, #tpu.memory_space<vmem>>, vector<1x1xf32>,
    } else {
    }
    %c0 = arith.constant 0 : index
    %c0_1 = arith.constant 0 : index
    %3 = vector.load %arg2[%c0, %c0_1] : memref<8x10xf32, #tpu.memory_space<vmem>>, vector<8x10xf32>
    %c0_2 = arith.constant 0 : index
    %c0_3 = arith.constant 0 : index
    %4 = vector.load %arg3[%c0_2, %c0_3] : memref<8x1xi32, #tpu.memory_space<vmem>>, vector<8x1xi32>
    %c1_i32 = arith.constant 1 : i32
    %5 = arith.muli %arg0, %c1_i32 : i32
    %6 = arith.addi %5, %arg1 : i32
    %c8_i32 = arith.constant 8 : i32
    %7 = arith.muli %6, %c8_i32 : i32
    %8 = tpu.iota {dimensions = array<i32: 0>} : vector<8x1xi32>
    %9 = vector.broadcast %7 : i32 to vector<8x1xi32>
    %10 = arith.addi %8, %9 : vector<8x1xi32>
    %c8_i32_4 = arith.constant 8 : i32
    %11 = vector.broadcast %c8_i32_4 : i32 to vector<8x1xi32>
    %12 = arith.cmpi slt, %10, %11 : vector<8x1xi32>
    %13 = tpu.iota {dimensions = array<i32: 1>} : vector<8x10xi32>
    %14 = vector.broadcast %4 : vector<8x1xi32> to vector<8x10xi32>
    %15 = arith.cmpi eq, %13, %14 : vector<8x10xi32>
    %cst = arith.constant dense<0xFF800000> : vector<8xf32>
    %16 = vector.multi_reduction <maximumf>, %3, %cst [1] : vector<8x10xf32> to vector<8xf32>
    %17 = vector.shape_cast %16 : vector<8xf32> to vector<8x1xf32>
    %18 = vector.broadcast %17 : vector<8x1xf32> to vector<8x10xf32>
    %19 = arith.subf %3, %18 : vector<8x10xf32>
    %cst_5 = arith.constant 0.000000e+00 : f32
    %20 = vector.shape_cast %12 : vector<8x1xi1> to vector<8x1xi1>
    %21 = vector.broadcast %20 : vector<8x1xi1> to vector<8x10xi1>
    %22 = vector.broadcast %cst_5 : f32 to vector<8x10xf32>
    %23 = arith.select %21, %19, %22 : vector<8x10xi1>, vector<8x10xf32>
    %24 = math.exp %23 : vector<8x10xf32>
    %cst_6 = arith.constant dense<0.000000e+00> : vector<8xf32>
    %25 = vector.multi_reduction <add>, %24, %cst_6 [1] : vector<8x10xf32> to vector<8xf32>
    %26 = vector.shape_cast %25 : vector<8xf32> to vector<8x1xf32>
    %cst_7 = arith.constant 1.000000e+00 : f32
    %27 = vector.broadcast %cst_7 : f32 to vector<8x1xf32>
    %28 = arith.divf %27, %26 : vector<8x1xf32>
    %cst_8 = arith.constant 0.000000e+00 : f32
    %29 = vector.broadcast %cst_8 : f32 to vector<8x10xf32>
    %30 = arith.select %15, %23, %29 : vector<8x10xi1>, vector<8x10xf32>
    %cst_9 = arith.constant dense<0.000000e+00> : vector<8xf32>
    %31 = vector.multi_reduction <add>, %30, %cst_9 [1] : vector<8x10xf32> to vector<8xf32>
    %32 = vector.shape_cast %31 : vector<8xf32> to vector<8x1xf32>
    %33 = math.log %26 : vector<8x1xf32>
    %34 = arith.subf %33, %32 : vector<8x1xf32>
    %35 = vector.broadcast %28 : vector<8x1xf32> to vector<8x10xf32>
    %36 = arith.mulf %24, %35 : vector<8x10xf32>
    %cst_10 = arith.constant 1.000000e-07 : f32
    %cst_11 = arith.constant 1.000000e+00 : f32
    %37 = vector.broadcast %cst_10 : f32 to vector<8x10xf32>
    %38 = arith.maximumf %37, %36 : vector<8x10xf32>
    %39 = vector.broadcast %cst_11 : f32 to vector<8x10xf32>
    %40 = arith.minimumf %39, %38 : vector<8x10xf32>
    %cst_12 = arith.constant 0.000000e+00 : f32
    %41 = vector.broadcast %cst_12 : f32 to vector<8x10xf32>
    %42 = arith.select %15, %41, %40 : vector<8x10xi1>, vector<8x10xf32>
    %cst_13 = arith.constant dense<0.000000e+00> : vector<8xf32>
    %43 = vector.multi_reduction <add>, %42, %cst_13 [1] : vector<8x10xf32> to vector<8xf32>
    %44 = vector.shape_cast %43 : vector<8xf32> to vector<8x1xf32>
    %cst_14 = arith.constant 9.21034049 : f32
    %45 = vector.broadcast %cst_14 : f32 to vector<8x1xf32>
    %46 = arith.mulf %45, %44 : vector<8x1xf32>
    %cst_15 = arith.constant 1.000000e+00 : f32
    %47 = vector.broadcast %cst_15 : f32 to vector<8x1xf32>
    %48 = arith.mulf %47, %34 : vector<8x1xf32>
    %cst_16 = arith.constant 1.000000e+00 : f32
    %49 = vector.broadcast %cst_16 : f32 to vector<8x1xf32>
    %50 = arith.mulf %49, %46 : vector<8x1xf32>
    %51 = arith.addf %48, %50 : vector<8x1xf32>
    %52 = arith.extui %12 : vector<8x1xi1> to vector<8x1xi32>
    %53 = arith.sitofp %52 : vector<8x1xi32> to vector<8x1xf32>
    %54 = arith.mulf %51, %53 : vector<8x1xf32>
    %c0_17 = arith.constant 0 : index
    %c0_18 = arith.constant 0 : index
    %55 = vector.load %arg5[%c0_17, %c0_18] : memref<1x1xf32, #tpu.memory_space<vmem>>, vector<1x1xf32>
    %cst_19 = arith.constant dense<0.000000e+00> : vector<1xf32>
    %56 = vector.multi_reduction <add>, %54, %cst_19 [0] : vector<8x1xf32> to vector<1xf32>
    %57 = vector.shape_cast %56 : vector<1xf32> to vector<1x1xf32>
    %58 = arith.addf %55, %57 : vector<1x1xf32>
    %c0_20 = arith.constant 0 : index
    %c0_21 = arith.constant 0 : index
    %59 = vector.load %arg5[%c0_20, %c0_21] : memref<1x1xf32, #tpu.memory_space<vmem>>, vector<1x1xf32>
    tpu.vector_store %arg5[%c0_20, %c0_21], %58 {strides = array<i32>} : memref<1x1xf32, #tpu.memory_space<vmem>>, vector<1x1xf32>,
    %c0_i32_22 = arith.constant 0 : i32
    %60 = arith.cmpi eq, %arg1, %c0_i32_22 : i32
    %61 = arith.extui %60 : i1 to i32
    %c0_i32_23 = arith.constant 0 : i32
    %62 = arith.cmpi ne, %61, %c0_i32_23 : i32
    scf.if %62 {
      %c0_24 = arith.constant 0 : index
      %c0_25 = arith.constant 0 : index
      %63 = vector.load %arg5[%c0_24, %c0_25] : memref<1x1xf32, #tpu.memory_space<vmem>>, vector<1x1xf32>
      %cst_26 = arith.constant 1.250000e-01 : f32
      %64 = vector.broadcast %cst_26 : f32 to vector<1x1xf32>
      %65 = arith.mulf %63, %64 : vector<1x1xf32>
      %66 = vector.shape_cast %65 : vector<1x1xf32> to vector<1x1xf32>
      %67 = vector.broadcast %66 : vector<1x1xf32> to vector<8x128xf32>
      %c0_27 = arith.constant 0 : index
      %c0_28 = arith.constant 0 : index
      %68 = vector.load %arg4[%c0_27, %c0_28] : memref<8x128xf32, #tpu.memory_space<vmem>>, vector<8x128xf32>
      tpu.vector_store %arg4[%c0_27, %c0_28], %67 {strides = array<i32>} : memref<8x128xf32, #tpu.memory_space<vmem>>, vector<8x128xf32>,
    } else {
    }
    return
  }
  func.func @transform_0(%arg0: i32, %arg1: i32) -> (i32, i32) {
    %c1_i32 = arith.constant 1 : i32
    %0 = arith.muli %arg0, %c1_i32 : i32
    %1 = arith.addi %0, %arg1 : i32
    %c0_i32 = arith.constant 0 : i32
    %2 = arith.minsi %1, %c0_i32 : i32
    %c0_i32_0 = arith.constant 0 : i32
    %c0_i32_1 = arith.constant 0 : i32
    return %2, %c0_i32_0 : i32, i32
  }
  func.func @transform_1(%arg0: i32, %arg1: i32) -> (i32, i32) {
    %c1_i32 = arith.constant 1 : i32
    %0 = arith.muli %arg0, %c1_i32 : i32
    %1 = arith.addi %0, %arg1 : i32
    %c0_i32 = arith.constant 0 : i32
    %2 = arith.minsi %1, %c0_i32 : i32
    %c0_i32_0 = arith.constant 0 : i32
    %c0_i32_1 = arith.constant 0 : i32
    return %2, %c0_i32_0 : i32, i32
  }
  func.func @transform_2(%arg0: i32, %arg1: i32) -> (i32, i32) {
    %c0_i32 = arith.constant 0 : i32
    %c0_i32_0 = arith.constant 0 : i32
    return %arg0, %c0_i32 : i32, i32
  }
}

</mosaic_0001>

<llo_original>
// kernel: tpu_custom_call.1
$region0: #{tpu_custom_call.1}
  #allocation0 [shape = 'u32[]', space=smem, size = 0x4, offset = 0x4, fixed_abs, tag = 'smem constant byte address 0x4 - core index']
  #allocation1 [shape = 'u32[144,128]{1,0:T(1,128)}', space=vmem, size = 0x12000, scoped, tag = 'internal scratch']
  #allocation2 [shape = 'f32[1,1]{1,0:T(1,128)}', space=vmem, size = 0x200, scoped, tag = 'scratch operand']
  %s0 = inlined_call_operand.vmem [shape: f32[8,10], index: 0, kind: input, shape index: {}]
  %s1 = inlined_call_operand.vmem [shape: s32[8,1], index: 1, kind: input, shape index: {}]
  %s2 = inlined_call_operand.hbm [shape: f32[16,128], index: 2, kind: output, shape index: {}]
  %s3 = sld [smem:[#allocation0]]
  $region49: #{tpu_custom_call.1} parent=0
    _
  %s5 = ssub.s32 1, %s3
  %s6 = scalar_select 0, %s5, %s3
  $region1: #{tpu_custom_call.1} parent=0
    #allocation3 [shape = 'u8[8192]{0}', space=vmem, size = 0x2000, scoped, tag = 'output window, operand 0']
    #allocation4 [shape = 's32[2]{0}', space=sflag, size = 0x8, scoped, tag = 'scoped memory for tpu_custom_call.1']
    %7 = vsyncpa [#allocation4], 0
    %s8 = scalar_lea.sflag [#allocation4], 1
    %9 = vsyncpa %s8, 0
    loop: start=0, step=1, limit=4
    $region2: #{tpu_custom_call.1} parent=1 // loop_pre_header
      _
    $region3: #{tpu_custom_call.1} parent=1 // loop_header
      %s11 = sphi 0, %s15
      %p12 = scmp.ge.s32.totalorder %s11, 4
      %s18 = sphi 0, %s30
      %s19 = sphi 0, %s26
      %s20 = sphi 0, %s18
      %s21 = sphi 0, %s19
      %s22 = sphi 0, %s20
      %s23 = sphi 0, %s21
      %s39 = sphi 0, %s41
      %s42 = sphi 0, %s39
      %s43 = sphi 0, %s42
      %s59 = sphi 0, %s43
      %s71 = sphi 0, %s73
      %s74 = sphi 0, %s71
      %s75 = sphi 0, %s74
      %s91 = sphi 0, %s75
      %s97 = sphi 0, %s99
      %s100 = sphi 0, %s97
      %s101 = sphi 0, %s100
      %s117 = sphi 0, %s101
    $region4: #{tpu_custom_call.1} parent=1 // loop_header_branch
      %14 = sbr.rel (%p12) target = $region8
    $region5: #{tpu_custom_call.1} parent=1 // loop_body
      %s16 = ssub.s32 %s11, 1
      %s17 = ssub.s32 %s11, 2
      %s24 = sadd.s32 1, %s19
      %p25 = scmp.ge.s32.totalorder %s24, 1
      %s26 = scalar_select %p25, 0, %s24
      %s27 = sadd.s32 1, %s18
      %s28 = scalar_select %p25, %s27, %s18
      %p29 = scmp.ge.s32.totalorder %s28, 2
      %s30 = scalar_select %p29, 0, %s28
      %s31 = sadd.s32 %s18, %s19
      %p32 = scmp.lt.s32.totalorder %s31, 0
      %s33 = scalar_select %p32, %s31, 0
      %s34 = sadd.s32 %s30, %s26
      %p35 = scmp.lt.s32.totalorder %s34, 0
      %s36 = scalar_select %p35, %s34, 0
      %s37 = ssub.s32 %s33, %s36
      %p38 = scmp.eq.s32.totalorder %s37, 0
      %s40 = sadd.s32 %s39, 1
      %s41 = scalar_select %p38, %s39, %s40
      %p44 = pneg %p38
      %p45 = scmp.eq.s32.totalorder %s11, 1
      %p46 = por %p44, %p45
      %p47 = scmp.ne.s32.totalorder %s39, %s42
      %p48 = scmp.eq.s32.totalorder %s11, 0
      %p49 = por %p47, %p48
      %p50 = scmp.ne.s32.totalorder %s39, %s42
      %p51 = scmp.eq.s32.totalorder %s16, 1
      %p52 = por %p50, %p51
      %p53 = scmp.ne.s32.totalorder %s42, %s43
      %p54 = scmp.eq.s32.totalorder %s16, 0
      %p55 = por %p53, %p54
      %p56 = scmp.ne.s32.totalorder %s42, %s43
      %p57 = scmp.eq.s32.totalorder %s17, 1
      %p58 = por %p56, %p57
      %p60 = scmp.ne.s32.totalorder %s43, %s59
      %p61 = scmp.eq.s32.totalorder %s17, 0
      %p62 = por %p60, %p61
      %s63 = sadd.s32 %s18, %s19
      %p64 = scmp.lt.s32.totalorder %s63, 0
      %s65 = scalar_select %p64, %s63, 0
      %s66 = sadd.s32 %s30, %s26
      %p67 = scmp.lt.s32.totalorder %s66, 0
      %s68 = scalar_select %p67, %s66, 0
      %s69 = ssub.s32 %s65, %s68
      %p70 = scmp.eq.s32.totalorder %s69, 0
      %s72 = sadd.s32 %s71, 1
      %s73 = scalar_select %p70, %s71, %s72
      %p76 = pneg %p70
      %p77 = scmp.eq.s32.totalorder %s11, 1
      %p78 = por %p76, %p77
      %p79 = scmp.ne.s32.totalorder %s71, %s74
      %p80 = scmp.eq.s32.totalorder %s11, 0
      %p81 = por %p79, %p80
      %p82 = scmp.ne.s32.totalorder %s71, %s74
      %p83 = scmp.eq.s32.totalorder %s16, 1
      %p84 = por %p82, %p83
      %p85 = scmp.ne.s32.totalorder %s74, %s75
      %p86 = scmp.eq.s32.totalorder %s16, 0
      %p87 = por %p85, %p86
      %p88 = scmp.ne.s32.totalorder %s74, %s75
      %p89 = scmp.eq.s32.totalorder %s17, 1
      %p90 = por %p88, %p89
      %p92 = scmp.ne.s32.totalorder %s75, %s91
      %p93 = scmp.eq.s32.totalorder %s17, 0
      %p94 = por %p92, %p93
      %s95 = ssub.s32 %s18, %s30
      %p96 = scmp.eq.s32.totalorder %s95, 0
      %s98 = sadd.s32 %s97, 1
      %s99 = scalar_select %p96, %s97, %s98
      %p102 = pneg %p96
      %p103 = scmp.eq.s32.totalorder %s11, 1
      %p104 = por %p102, %p103
      %p105 = scmp.ne.s32.totalorder %s97, %s100
      %p106 = scmp.eq.s32.totalorder %s11, 0
      %p107 = por %p105, %p106
      %p108 = scmp.ne.s32.totalorder %s97, %s100
      %p109 = scmp.eq.s32.totalorder %s16, 1
      %p110 = por %p108, %p109
      %p111 = scmp.ne.s32.totalorder %s100, %s101
      %p112 = scmp.eq.s32.totalorder %s16, 0
      %p113 = por %p111, %p112
      %p114 = scmp.ne.s32.totalorder %s100, %s101
      %p115 = scmp.eq.s32.totalorder %s17, 1
      %p116 = por %p114, %p115
      %p118 = scmp.ne.s32.totalorder %s101, %s117
      %p119 = scmp.eq.s32.totalorder %s17, 0
      %p120 = por %p118, %p119
      %p121 = scmp.le.s32.totalorder 1, %s11
      %p122 = scmp.lt.s32.totalorder %s11, 3
      %p123 = pnand %p121, %p122
      %p124 = pneg %p123
      // Predicated region
      $region9: #{tpu_custom_call.1} parent=5 // pred_check
        _
      $region10: #{tpu_custom_call.1} parent=5 // pred_check_branch
        %126 = sbr.rel (%p123) target = $region12
      $region11: #{tpu_custom_call.1} parent=5 // pred_region
        %s127 = ssub.s32 %s11, 1
      $region12: #{tpu_custom_call.1} parent=5 // pred_fallthru
        _
      %p128 = scmp.lt.s32.totalorder %s11, 2
      // Predicated region
      $region13: #{tpu_custom_call.1} parent=5 // pred_check
        %p129 = pneg %p128
      $region14: #{tpu_custom_call.1} parent=5 // pred_check_branch
        %131 = sbr.rel (%p129) target = $region16
      $region15: #{tpu_custom_call.1} parent=5 // pred_region
        // Predicated region
        $region17: #{tpu_custom_call.1} parent=15 // pred_check
          %p132 = pneg %p49
        $region18: #{tpu_custom_call.1} parent=15 // pred_check_branch
          %134 = sbr.rel (%p132) target = $region20
        $region19: #{tpu_custom_call.1} parent=15 // pred_region
          %s135 = sadd.s32 %s18, %s19
          %p136 = scmp.lt.s32.totalorder %s135, 0
          %s137 = scalar_select %p136, %s135, 0
          %p138 = scmp.lt.s32.totalorder %s137, 0
          %s139 = scalar_select %p138, %s137, 0
          %s140 = smul.addr %s139, 8
          %s141 = scalar_lea.vmem %s0, %s140
          %s142 = sadd.s32 %s18, %s19
          %p143 = scmp.lt.s32.totalorder %s142, 0
          %s144 = scalar_select %p143, %s142, 0
        $region20: #{tpu_custom_call.1} parent=15 // pred_fallthru
          _
        // Predicated region
        $region21: #{tpu_custom_call.1} parent=15 // pred_check
          %p145 = pneg %p81
        $region22: #{tpu_custom_call.1} parent=15 // pred_check_branch
          %147 = sbr.rel (%p145) target = $region24
        $region23: #{tpu_custom_call.1} parent=15 // pred_region
          %s148 = sadd.s32 %s18, %s19
          %p149 = scmp.lt.s32.totalorder %s148, 0
          %s150 = scalar_select %p149, %s148, 0
          %p151 = scmp.lt.s32.totalorder %s150, 0
          %s152 = scalar_select %p151, %s150, 0
          %s153 = smul.addr %s152, 8
          %s154 = scalar_lea.vmem %s1, %s153
          %s155 = sadd.s32 %s18, %s19
          %p156 = scmp.lt.s32.totalorder %s155, 0
          %s157 = scalar_select %p156, %s155, 0
        $region24: #{tpu_custom_call.1} parent=15 // pred_fallthru
          _
      $region16: #{tpu_custom_call.1} parent=5 // pred_fallthru
        _
      %p158 = scmp.le.s32.totalorder 1, %s11
      %p159 = scmp.lt.s32.totalorder %s11, 3
      %p160 = pnand %p158, %p159
      %p161 = pneg %p160
      // Predicated region
      $region25: #{tpu_custom_call.1} parent=5 // pred_check
        _
      $region26: #{tpu_custom_call.1} parent=5 // pred_check_branch
        %163 = sbr.rel (%p160) target = $region28
      $region27: #{tpu_custom_call.1} parent=5 // pred_region
        %s164 = ssub.s32 %s11, 1
        %s165 = sadd.s32 %s20, %s21
        %p166 = scmp.lt.s32.totalorder %s165, 0
        %s167 = scalar_select %p166, %s165, 0
        %p168 = scmp.lt.s32.totalorder %s167, 0
        %s169 = scalar_select %p168, %s167, 0
        %s170 = smul.addr %s169, 8
        %s171 = scalar_lea.vmem %s0, %s170
        %p172 = pneg %p55
        %p173 = pneg %p52
        %s174 = sadd.s32 %s20, %s21
        %p175 = scmp.lt.s32.totalorder %s174, 0
        %s176 = scalar_select %p175, %s174, 0
        %p177 = scmp.lt.s32.totalorder %s176, 0
        %s178 = scalar_select %p177, %s176, 0
        %s179 = smul.addr %s178, 8
        %s180 = scalar_lea.vmem %s1, %s179
        %p181 = pneg %p87
        %p182 = pneg %p84
        %p183 = pneg %p113
        %p184 = pneg %p110
        %s185 = sand.u32 %s100, 1
        %s186 = scalar_lea.sflag [#allocation4], %s185
        %s187 = sand.u32 %s100, 1
        %s188 = smul.addr %s187, 8
        %s189 = scalar_lea.vmem [#allocation3], %s188
        %s190 = sadd.s32 %s20, %s21
        %p191 = scmp.lt.s32.totalorder %s190, 0
        %s192 = scalar_select %p191, %s190, 0
        %p193 = scmp.lt.s32.totalorder %s192, 0
        %s194 = scalar_select %p193, %s192, 0
        %s195 = smul.addr %s194, 8
        %s196 = scalar_lea.vmem %s0, %s195
        %s197 = sadd.s32 %s20, %s21
        %p198 = scmp.lt.s32.totalorder %s197, 0
        %s199 = scalar_select %p198, %s197, 0
        %s200 = sadd.s32 %s20, %s21
        %p201 = scmp.lt.s32.totalorder %s200, 0
        %s202 = scalar_select %p201, %s200, 0
        %p203 = scmp.lt.s32.totalorder %s202, 0
        %s204 = scalar_select %p203, %s202, 0
        %s205 = smul.addr %s204, 8
        %s206 = scalar_lea.vmem %s1, %s205
        %s207 = sadd.s32 %s20, %s21
        %p208 = scmp.lt.s32.totalorder %s207, 0
        %s209 = scalar_select %p208, %s207, 0
        %p210 = scmp.eq.s32.totalorder %s21, 0
        // Predicated region
        $region29: #{tpu_custom_call.1} parent=27 // pred_check
          %p211 = pneg %p210
        $region30: #{tpu_custom_call.1} parent=27 // pred_check_branch
          %213 = sbr.rel (%p211) target = $region32
        $region31: #{tpu_custom_call.1} parent=27 // pred_region
          %vm214 = vcmask 0
          %215 = vst.msk [vmem:[#allocation2] sm:$0x1] %vm214, 0.0
        $region32: #{tpu_custom_call.1} parent=27 // pred_fallthru
          _
        %v216 = vld [vmem:[%s196] sm:$0xff]
        %v217 = vld [vmem:[%s206] sm:$0xff]
        %s218 = sadd.s32 %s20, %s21
        %s219 = smul.u32 %s218, 8
        %v220 = vlaneseq
        %v221 = vshrl.u32 %v220, 7
        %v222 = vstv %s219
        %v223 = vadd.s32 %v221, %v222
        %vm224 = vcmp.lt.s32.totalorder %v223, 8
        %v225 = vlaneseq
        %v226 = vand.u32 %v225, 127
        %227 = vset.pattern.permute.xlu0 0
        %228 = vperm.xlu0 %227, %v217
        %v229 = vpop.permute.xlu0 %228
        %vm230 = vcmp.eq.s32.totalorder %v226, %v229
        %vm231 = vcmask 80896
        %v232 = vsel %vm231, %v216, -inf
        %233 = vmax.xlane.f32.xlu0 %v232
        %v234 = vpop.xlane.xlu0 %233
        %v235 = vsub.f32 %v216, %v234
        %v236 = vsel %vm224, 1, 0
        %vm237 = vcmp.eq.s32.totalorder %v236, 1
        %v238 = vsel %vm237, %v235, 0.0
        %v239 = vmul.f32 %v238, 1.442695
        %v240 = vpow.pop %v239
        %v241 = vsel %vm231, %v240, 0.0
        %242 = vadd.xlane.f32.xlu0 %v241
        %v243 = vpop.xlane.xlu0 %242
        %v244 = vrcp.pop %v243
        %v245 = vmul.f32 1.0, %v244
        %v246 = vsel %vm230, %v238, 0.0
        %v247 = vsel %vm231, %v246, 0.0
        %248 = vadd.xlane.f32.xlu0 %v247
        %v249 = vpop.xlane.xlu0 %248
        %v250 = vlog2.pop %v243
        %v251 = vmul.f32 %v250, 0.6931472
        %v252 = vsub.f32 %v251, %v249
        %v253 = vmul.f32 %v240, %v245
        %v254 = vmax.f32 %v253, 1e-07
        %v255 = vmin.f32 %v254, 1.0
        %v256 = vsel %vm230, 0.0, %v255
        %v257 = vsel %vm231, %v256, 0.0
        %258 = vadd.xlane.f32.xlu0 %v257
        %v259 = vpop.xlane.xlu0 %258
        %v260 = vmul.f32 %v259, 9.2103405
        %v261 = vadd.f32 %v252, %v260
        %v262 = vcvt.s32.f32 %v236
        %v263 = vmul.f32 %v261, %v262
        %v264 = vld [vmem:[#allocation2] sm:$0x1]
        %v265 = vrot.slane %v263, 4
        %v266 = vadd.f32 %v263, %v265
        %v267 = vrot.slane %v266, 2
        %v268 = vadd.f32 %v266, %v267
        %v269 = vrot.slane %v268, 1
        %v270 = vadd.f32 %v268, %v269
        %v271 = vadd.f32 %v264, %v270
        %vm272 = vcmask 0
        %273 = vst.msk [vmem:[#allocation2] sm:$0x1] %vm272, %v271
        // Predicated region
        $region33: #{tpu_custom_call.1} parent=27 // pred_check
          %p274 = pneg %p210
        $region34: #{tpu_custom_call.1} parent=27 // pred_check_branch
          %276 = sbr.rel (%p274) target = $region36
        $region35: #{tpu_custom_call.1} parent=27 // pred_region
          %v277 = vld [vmem:[#allocation2] sm:$0x1]
          %v278 = vmul.f32 %v277, 0.125
          %v280 = vlaneseq
          %v281 = vshrl.u32 %v280, 7
          %v282 = vsub.s32 0, %v281
          %v283 = vrot.slane %v278, %v282
          %284 = vset.pattern.permute.xlu0 0
          %285 = vperm.xlu0 %284, %v283
          %v286 = vpop.permute.xlu0 %285
          %288 = vst [vmem:[%s189] sm:$0xff] %v286
        $region36: #{tpu_custom_call.1} parent=27 // pred_fallthru
          _
        %s289 = sand.u32 %s100, 1
        %s290 = scalar_lea.sflag [#allocation4], %s289
        %s291 = sand.u32 %s100, 1
        %s292 = smul.addr %s291, 8
        %s293 = scalar_lea.vmem [#allocation3], %s292
        // Predicated region
        $region37: #{tpu_custom_call.1} parent=27 // pred_check
          %p294 = pneg %p110
        $region38: #{tpu_custom_call.1} parent=27 // pred_check_branch
          %296 = sbr.rel (%p294) target = $region40
        $region39: #{tpu_custom_call.1} parent=27 // pred_region
          %s298 = ssub.s32 128, 128
          %299 = vsyncadd %s290, %s298
          %s300 = smul.addr %s20, 128
          %s301 = scalar_lea.hbm %s2, %s300
          %s303 = sshll.u32 %s293, 4
          %s304 = int_to_ptr.vmem [resolvable:$true] %s303
          %306 = dma.vmem_to_hbm [thread:$0]  %s304, 128, %s301, %s290
        $region40: #{tpu_custom_call.1} parent=27 // pred_fallthru
          _
      $region28: #{tpu_custom_call.1} parent=5 // pred_fallthru
        _
      %p307 = scmp.le.s32.totalorder 2, %s11
      // Predicated region
      $region41: #{tpu_custom_call.1} parent=5 // pred_check
        %p308 = pneg %p307
      $region42: #{tpu_custom_call.1} parent=5 // pred_check_branch
        %310 = sbr.rel (%p308) target = $region44
      $region43: #{tpu_custom_call.1} parent=5 // pred_region
        %s311 = ssub.s32 %s11, 2
        // Predicated region
        $region45: #{tpu_custom_call.1} parent=43 // pred_check
          %p312 = pneg %p116
        $region46: #{tpu_custom_call.1} parent=43 // pred_check_branch
          %314 = sbr.rel (%p312) target = $region48
        $region47: #{tpu_custom_call.1} parent=43 // pred_region
          %s315 = sand.u32 %s101, 1
          %s316 = scalar_lea.sflag [#allocation4], %s315
          %s317 = sand.u32 %s101, 1
          %s318 = smul.addr %s317, 8
          %s319 = scalar_lea.vmem [#allocation3], %s318
          %320 = dma.done %s316, 128
        $region48: #{tpu_custom_call.1} parent=43 // pred_fallthru
          _
      $region44: #{tpu_custom_call.1} parent=5 // pred_fallthru
        _
    $region6: #{tpu_custom_call.1} parent=1 // loop_footer
      %s15 = sadd.s32 1, %s11
    $region7: #{tpu_custom_call.1} parent=1 // loop_footer_branch
      %10 = sbr.rel target = $region3
    $region8: #{tpu_custom_call.1} parent=1 // loop_exit
      _
    %321 = vsyncpa [#allocation4], 1
    %s322 = scalar_lea.sflag [#allocation4], 1
    %323 = vsyncpa %s322, 1

</llo_original>
